<compile_context>
chip_gen: v6e
topology: v6e:2x2x1
jax: 0.10.0
libtpu: 0.0.40
codegen_flags: <defaults>
</compile_context>

<pallas_src>
import math

import jax
import jax.numpy as jnp
from jax import lax
from jax.experimental import pallas as pl
from jax.experimental.pallas import tpu as pltpu

# -ln(1e-4): the only nonzero value log(clip(one_hot, 1e-4, 1)) can take.
_RCE_SCALE = -math.log(1e-4)

# Dimension-semantics values (string fallbacks for older jax versions).
_ARBITRARY = getattr(pltpu, "ARBITRARY", "arbitrary")
_CORE_PARALLEL = getattr(pltpu, "CORE_PARALLEL", "parallel")


def _has_two_tensorcores():
    """True on chips with 2 TensorCores per chip (v7x-class)."""
    try:
        kind = jax.devices()[0].device_kind.lower()
    except Exception:
        return False
    return "v7" in kind


def _make_rce_kernel(n_total, tiles_per_chunk, tn, natural_layout):
    inv_n = _RCE_SCALE / n_total

    def kernel(x_ref, t_ref, out_ref, acc_ref):
        g = pl.program_id(0)   # chunk (split across TensorCores on v7x)
        i = pl.program_id(1)   # tile within chunk (reduction / "arbitrary")

        @pl.when(i == 0)
        def _init():
            acc_ref[...] = jnp.zeros_like(acc_ref)

        # Native-dtype DMA; cast to f32 in VMEM.
        x = x_ref[...].astype(jnp.float32)
        if natural_layout:
            # (tn, c) natural block -> (c, tn): classes on sublanes, samples on
            # the 128-wide lane axis, so EUP/VPU work uses ~all lanes.  The
            # relayout is XLU work and overlaps the EUP exp.
            x = jnp.transpose(x, (1, 0))
        c, tile_n = x.shape

        # Numerically-stable softmax over the class (sublane) axis.
        m = jnp.max(x, axis=0, keepdims=True)                 # (1, tn)
        e = jnp.exp(x - m)
        s = jnp.sum(e, axis=0, keepdims=True)                 # (1, tn)
        # Exact reciprocal: approx vrcp (~1e-4 rel err) would miss 1e-5 atol.
        prob = jnp.clip(e * pl.reciprocal(s, approx=False), 1e-7, 1.0)

        # loss_i = _RCE_SCALE * sum over off-target classes of clipped prob.
        cls_ids = lax.broadcasted_iota(jnp.int32, (c, tile_n), 0)
        off_target = jnp.where(cls_ids == t_ref[...], 0.0, prob)
        per_sample = jnp.sum(off_target, axis=0, keepdims=True)  # (1, tn)

        tile_idx = g * tiles_per_chunk + i
        # True only for the ragged last tile / fully-overflow duplicate tiles.
        is_partial = (tile_idx + 1) * tn > n_total

        @pl.when(jnp.logical_not(is_partial))
        def _accumulate_full():
            acc_ref[...] += per_sample

        @pl.when(is_partial)
        def _accumulate_masked():
            # Keep this a select (not a multiply) so NaN/Inf produced from
            # stale out-of-range lanes never reaches the accumulator.
            col = lax.broadcasted_iota(jnp.int32, (1, tile_n), 1) + tile_idx * tn
            acc_ref[...] += jnp.where(col < n_total, per_sample, 0.0)

        @pl.when(i == pl.num_programs(1) - 1)
        def _finalize():
            # Single cross-lane reduction per chunk; per-chunk partial means
            # are summed in the wrapper.  Lane-dense 128-wide output slab.
            total = jnp.sum(acc_ref[...], axis=1, keepdims=True)   # (1, 1)
            out_ref[...] = jnp.broadcast_to(total, out_ref.shape) * inv_n

    return kernel


def _rce_impl(x, target, num_classes, *, natural_layout, allow_chunks):
    n, c = x.shape
    assert c == num_classes

    two_cores = _has_two_tensorcores()

    # Lane-axis tile (samples per tile).
    if natural_layout:
        # Natural (tn, c) input blocks lane-pad c=10 -> 128 in VMEM
        # (tn * 512 B per buffer, double-buffered): keep the footprint modest,
        # especially on v7x (64 MiB VMEM / 32 MiB scoped).
        tn_cap = 8192 if two_cores else 16384
    else:
        # Pre-transposed (c, tn) blocks are lane-dense and tiny; bigger tiles
        # just cut per-grid-step overhead.
        tn_cap = 32768
    tn = n if n <= tn_cap else tn_cap            # full-extent block for small N
    total_tiles = pl.cdiv(n, tn)

    # 2-chunk split only where there are 2 TensorCores and >= 2 tiles.
    num_chunks = 2 if (allow_chunks and two_cores and total_tiles >= 2) else 1
    tiles_per_chunk = pl.cdiv(total_tiles, num_chunks)
    last_block = total_tiles - 1                 # clamp for overflow tiles

    kernel = _make_rce_kernel(n, tiles_per_chunk, tn, natural_layout)

    t2d = target.astype(jnp.int32).reshape(1, n)
    if natural_layout:
        x_in = x                                 # (N, C): no wrapper transpose
        x_spec = pl.BlockSpec(
            (tn, c),
            lambda g, i: (jnp.minimum(g * tiles_per_chunk + i, last_block), 0))
    else:
        x_in = x.T                               # fallback: XLA materializes (C, N)
        x_spec = pl.BlockSpec(
            (c, tn),
            lambda g, i: (0, jnp.minimum(g * tiles_per_chunk + i, last_block)))
    t_spec = pl.BlockSpec(
        (1, tn),
        lambda g, i: (0, jnp.minimum(g * tiles_per_chunk + i, last_block)))

    if num_chunks == 2:
        dim_sem = (_CORE_PARALLEL, _ARBITRARY)   # genuine 2-TC split on v7x
    else:
        dim_sem = (_ARBITRARY, _ARBITRARY)

    partials = pl.pallas_call(
        kernel,
        out_shape=jax.ShapeDtypeStruct((1, 128 * num_chunks), jnp.float32),
        grid=(num_chunks, tiles_per_chunk),
        in_specs=[x_spec, t_spec],
        out_specs=pl.BlockSpec((1, 128), lambda g, i: (0, g)),
        scratch_shapes=[pltpu.VMEM((1, tn), jnp.float32)],
        compiler_params=pltpu.CompilerParams(
            dimension_semantics=dim_sem,
            vmem_limit_bytes=(32 if two_cores else 64) * 1024 * 1024,
        ),
    )(x_in, t2d)

    # Each chunk's partial mean is replicated across its 128-lane slab.
    return jnp.sum(partials.reshape(num_chunks, 128)[:, 0])


# Configurations tried in order; the first one that lowers/runs is kept.
_CONFIGS = (
    dict(natural_layout=True, allow_chunks=True),    # fused in-kernel transpose
    dict(natural_layout=False, allow_chunks=True),   # pre-transposed input
    dict(natural_layout=False, allow_chunks=False),  # most conservative
)
_VALIDATED = set()   # config indices that completed a call successfully
_DISABLED = set()    # config indices that raised (skip on later calls)


def rce_loss(x, target, num_classes=10, reduction="mean"):
    """Pallas implementation of RCELoss.forward (mean reduction)."""
    assert x.ndim == 2 and x.shape[-1] == num_classes
    # TODO(synk): reduction='none' (per-sample loss output) not implemented;
    # the module's default 'mean' path is what this kernel provides.
    assert reduction == "mean"

    last_err = None
    for idx, cfg in enumerate(_CONFIGS):
        if idx in _DISABLED:
            continue
        try:
            out = _rce_impl(x, target, num_classes, **cfg)
            if idx not in _VALIDATED:
                jax.block_until_ready(out)   # surface compile/run errors here
                _VALIDATED.add(idx)
            return out
        except Exception as err:             # lowering unsupported -> fall back
            _DISABLED.add(idx)
            last_err = err
    raise last_err


def rce_loss_ref(x, target, num_classes=10):
    # Pure-JAX reference of the PyTorch forward.
    prob = jax.nn.softmax(x.astype(jnp.float32), axis=-1)
    prob = jnp.clip(prob, 1e-07, 1.0)
    one_hot = jax.nn.one_hot(target, num_classes, dtype=jnp.float32)
    one_hot = jnp.clip(one_hot, 0.0001, 1.0)
    loss = -jnp.sum(prob * jnp.log(one_hot), axis=-1)
    return jnp.mean(loss)


if __name__ == "__main__":
    num_classes = 10

    key = jax.random.PRNGKey(0)
    kx, kt, kx2, kt2 = jax.random.split(key, 4)

    # Small demo shape consistent with the module (num_classes=10).
    batch = 8
    x = jax.random.normal(kx, (batch, num_classes), dtype=jnp.float32)
    target = jax.random.randint(kt, (batch,), 0, num_classes, dtype=jnp.int32)

    out = jax.block_until_ready(rce_loss(x, target, num_classes=num_classes))
    ref = rce_loss_ref(x, target, num_classes=num_classes)
    assert jnp.allclose(out, ref, rtol=1e-5, atol=1e-5), (out, ref)

    # Larger check: exercises N-tiling / pipelining, the ragged last tile, and
    # (on v7x) the 2-chunk CORE_PARALLEL split with clamped overflow tiles.
    batch_big = 30000
    xb = jax.random.normal(kx2, (batch_big, num_classes), dtype=jnp.float32)
    tb = jax.random.randint(kt2, (batch_big,), 0, num_classes, dtype=jnp.int32)
    out_b = jax.block_until_ready(rce_loss(xb, tb, num_classes=num_classes))
    ref_b = rce_loss_ref(xb, tb, num_classes=num_classes)
    assert jnp.allclose(out_b, ref_b, rtol=1e-5, atol=1e-5), (out_b, ref_b)

    print("KERNEL_OK")
</pallas_src>

<mosaic_0001>
module attributes {stable_mosaic.version = 11 : i64} {
  func.func @kernel(%arg0: i32, %arg1: i32, %arg2: memref<8x10xf32, #tpu.memory_space<vmem>>, %arg3: memref<1x8xi32, #tpu.memory_space<vmem>>, %arg4: memref<1x128xf32, #tpu.memory_space<vmem>>, %arg5: memref<1x8xf32, #tpu.memory_space<vmem>>) attributes {dimension_semantics = [#tpu.dimension_semantics<arbitrary>, #tpu.dimension_semantics<arbitrary>], iteration_bounds = array<i64: 1, 1>, scalar_prefetch = 0 : i64, scratch_operands = 1 : i64, tpu.core_type = #tpu.core_type<tc>, window_params = [{transform_indices = @transform_0, window_bounds = array<i64: 8, 10>}, {transform_indices = @transform_1, window_bounds = array<i64: 1, 8>}, {transform_indices = @transform_2, window_bounds = array<i64: 1, 128>}]} {
    %c0_i32 = arith.constant 0 : i32
    %0 = arith.cmpi eq, %arg1, %c0_i32 : i32
    %1 = arith.extui %0 : i1 to i32
    %c0_i32_0 = arith.constant 0 : i32
    %2 = arith.cmpi ne, %1, %c0_i32_0 : i32
    scf.if %2 {
      %cst_15 = arith.constant 0.000000e+00 : f32
      %40 = vector.broadcast %cst_15 : f32 to vector<1x8xf32>
      %c0_16 = arith.constant 0 : index
      %c0_17 = arith.constant 0 : index
      %41 = vector.load %arg5[%c0_16, %c0_17] : memref<1x8xf32, #tpu.memory_space<vmem>>, vector<1x8xf32>
      tpu.vector_store %arg5[%c0_16, %c0_17], %40 {strides = array<i32>} : memref<1x8xf32, #tpu.memory_space<vmem>>, vector<1x8xf32>,
    } else {
    }
    %c0 = arith.constant 0 : index
    %c0_1 = arith.constant 0 : index
    %3 = vector.load %arg2[%c0, %c0_1] : memref<8x10xf32, #tpu.memory_space<vmem>>, vector<8x10xf32>
    %4 = tpu.transpose %3, [1, 0] : vector<8x10xf32> -> vector<10x8xf32>
    %cst = arith.constant dense<0xFF800000> : vector<8xf32>
    %5 = vector.multi_reduction <maximumf>, %4, %cst [0] : vector<10x8xf32> to vector<8xf32>
    %6 = vector.shape_cast %5 : vector<8xf32> to vector<1x8xf32>
    %7 = vector.broadcast %6 : vector<1x8xf32> to vector<10x8xf32>
    %8 = arith.subf %4, %7 : vector<10x8xf32>
    %9 = math.exp %8 : vector<10x8xf32>
    %cst_2 = arith.constant dense<0.000000e+00> : vector<8xf32>
    %10 = vector.multi_reduction <add>, %9, %cst_2 [0] : vector<10x8xf32> to vector<8xf32>
    %11 = vector.shape_cast %10 : vector<8xf32> to vector<1x8xf32>
    %12 = tpu.reciprocal %11 : vector<1x8xf32> -> vector<1x8xf32>
    %13 = vector.broadcast %12 : vector<1x8xf32> to vector<10x8xf32>
    %14 = arith.mulf %9, %13 : vector<10x8xf32>
    %cst_3 = arith.constant 1.000000e-07 : f32
    %cst_4 = arith.constant 1.000000e+00 : f32
    %15 = vector.broadcast %cst_3 : f32 to vector<10x8xf32>
    %16 = arith.maximumf %15, %14 : vector<10x8xf32>
    %17 = vector.broadcast %cst_4 : f32 to vector<10x8xf32>
    %18 = arith.minimumf %17, %16 : vector<10x8xf32>
    %19 = tpu.iota {dimensions = array<i32: 0>} : vector<10x8xi32>
    %c0_5 = arith.constant 0 : index
    %c0_6 = arith.constant 0 : index
    %20 = vector.load %arg3[%c0_5, %c0_6] : memref<1x8xi32, #tpu.memory_space<vmem>>, vector<1x8xi32>
    %21 = vector.broadcast %20 : vector<1x8xi32> to vector<10x8xi32>
    %22 = arith.cmpi eq, %19, %21 : vector<10x8xi32>
    %cst_7 = arith.constant 0.000000e+00 : f32
    %23 = vector.broadcast %cst_7 : f32 to vector<10x8xf32>
    %24 = arith.select %22, %23, %18 : vector<10x8xi1>, vector<10x8xf32>
    %cst_8 = arith.constant dense<0.000000e+00> : vector<8xf32>
    %25 = vector.multi_reduction <add>, %24, %cst_8 [0] : vector<10x8xf32> to vector<8xf32>
    %26 = vector.shape_cast %25 : vector<8xf32> to vector<1x8xf32>
    %c1_i32 = arith.constant 1 : i32
    %27 = arith.muli %arg0, %c1_i32 : i32
    %28 = arith.addi %27, %arg1 : i32
    %c1_i32_9 = arith.constant 1 : i32
    %29 = arith.addi %28, %c1_i32_9 : i32
    %c8_i32 = arith.constant 8 : i32
    %30 = arith.muli %29, %c8_i32 : i32
    %c8_i32_10 = arith.constant 8 : i32
    %31 = arith.cmpi sgt, %30, %c8_i32_10 : i32
    %true = arith.constant true
    %32 = arith.xori %31, %true : i1
    %33 = arith.extui %32 : i1 to i32
    %c0_i32_11 = arith.constant 0 : i32
    %34 = arith.cmpi ne, %33, %c0_i32_11 : i32
    scf.if %34 {
      %c0_15 = arith.constant 0 : index
      %c0_16 = arith.constant 0 : index
      %40 = vector.load %arg5[%c0_15, %c0_16] : memref<1x8xf32, #tpu.memory_space<vmem>>, vector<1x8xf32>
      %41 = arith.addf %40, %26 : vector<1x8xf32>
      %c0_17 = arith.constant 0 : index
      %c0_18 = arith.constant 0 : index
      %42 = vector.load %arg5[%c0_17, %c0_18] : memref<1x8xf32, #tpu.memory_space<vmem>>, vector<1x8xf32>
      tpu.vector_store %arg5[%c0_17, %c0_18], %41 {strides = array<i32>} : memref<1x8xf32, #tpu.memory_space<vmem>>, vector<1x8xf32>,
    } else {
    }
    %35 = arith.extui %31 : i1 to i32
    %c0_i32_12 = arith.constant 0 : i32
    %36 = arith.cmpi ne, %35, %c0_i32_12 : i32
    scf.if %36 {
      %40 = tpu.iota {dimensions = array<i32: 1>} : vector<1x8xi32>
      %c8_i32_15 = arith.constant 8 : i32
      %41 = arith.muli %28, %c8_i32_15 : i32
      %42 = vector.broadcast %41 : i32 to vector<1x8xi32>
      %43 = arith.addi %40, %42 : vector<1x8xi32>
      %c0_16 = arith.constant 0 : index
      %c0_17 = arith.constant 0 : index
      %44 = vector.load %arg5[%c0_16, %c0_17] : memref<1x8xf32, #tpu.memory_space<vmem>>, vector<1x8xf32>
      %c8_i32_18 = arith.constant 8 : i32
      %45 = vector.broadcast %c8_i32_18 : i32 to vector<1x8xi32>
      %46 = arith.cmpi slt, %43, %45 : vector<1x8xi32>
      %cst_19 = arith.constant 0.000000e+00 : f32
      %47 = vector.broadcast %cst_19 : f32 to vector<1x8xf32>
      %48 = arith.select %46, %26, %47 : vector<1x8xi1>, vector<1x8xf32>
      %49 = arith.addf %44, %48 : vector<1x8xf32>
      %c0_20 = arith.constant 0 : index
      %c0_21 = arith.constant 0 : index
      %50 = vector.load %arg5[%c0_20, %c0_21] : memref<1x8xf32, #tpu.memory_space<vmem>>, vector<1x8xf32>
      tpu.vector_store %arg5[%c0_20, %c0_21], %49 {strides = array<i32>} : memref<1x8xf32, #tpu.memory_space<vmem>>, vector<1x8xf32>,
    } else {
    }
    %c0_i32_13 = arith.constant 0 : i32
    %37 = arith.cmpi eq, %arg1, %c0_i32_13 : i32
    %38 = arith.extui %37 : i1 to i32
    %c0_i32_14 = arith.constant 0 : i32
    %39 = arith.cmpi ne, %38, %c0_i32_14 : i32
    scf.if %39 {
      %c0_15 = arith.constant 0 : index
      %c0_16 = arith.constant 0 : index
      %40 = vector.load %arg5[%c0_15, %c0_16] : memref<1x8xf32, #tpu.memory_space<vmem>>, vector<1x8xf32>
      %cst_17 = arith.constant dense<0.000000e+00> : vector<1xf32>
      %41 = vector.multi_reduction <add>, %40, %cst_17 [1] : vector<1x8xf32> to vector<1xf32>
      %42 = vector.shape_cast %41 : vector<1xf32> to vector<1x1xf32>
      %43 = vector.shape_cast %42 : vector<1x1xf32> to vector<1x1xf32>
      %44 = vector.broadcast %43 : vector<1x1xf32> to vector<1x128xf32>
      %cst_18 = arith.constant 1.15129256 : f32
      %45 = vector.broadcast %cst_18 : f32 to vector<1x128xf32>
      %46 = arith.mulf %44, %45 : vector<1x128xf32>
      %c0_19 = arith.constant 0 : index
      %c0_20 = arith.constant 0 : index
      %47 = vector.load %arg4[%c0_19, %c0_20] : memref<1x128xf32, #tpu.memory_space<vmem>>, vector<1x128xf32>
      tpu.vector_store %arg4[%c0_19, %c0_20], %46 {strides = array<i32>} : memref<1x128xf32, #tpu.memory_space<vmem>>, vector<1x128xf32>,
    } else {
    }
    return
  }
  func.func @transform_0(%arg0: i32, %arg1: i32) -> (i32, i32) {
    %c1_i32 = arith.constant 1 : i32
    %0 = arith.muli %arg0, %c1_i32 : i32
    %1 = arith.addi %0, %arg1 : i32
    %c0_i32 = arith.constant 0 : i32
    %2 = arith.minsi %1, %c0_i32 : i32
    %c0_i32_0 = arith.constant 0 : i32
    %c0_i32_1 = arith.constant 0 : i32
    return %2, %c0_i32_0 : i32, i32
  }
  func.func @transform_1(%arg0: i32, %arg1: i32) -> (i32, i32) {
    %c1_i32 = arith.constant 1 : i32
    %0 = arith.muli %arg0, %c1_i32 : i32
    %1 = arith.addi %0, %arg1 : i32
    %c0_i32 = arith.constant 0 : i32
    %2 = arith.minsi %1, %c0_i32 : i32
    %c0_i32_0 = arith.constant 0 : i32
    %c0_i32_1 = arith.constant 0 : i32
    return %c0_i32_0, %2 : i32, i32
  }
  func.func @transform_2(%arg0: i32, %arg1: i32) -> (i32, i32) {
    %c0_i32 = arith.constant 0 : i32
    %c0_i32_0 = arith.constant 0 : i32
    return %c0_i32, %arg0 : i32, i32
  }
}

module attributes {stable_mosaic.version = 11 : i64} {
  func.func @kernel(%arg0: i32, %arg1: i32, %arg2: memref<10x8xf32, #tpu.memory_space<vmem>>, %arg3: memref<1x8xi32, #tpu.memory_space<vmem>>, %arg4: memref<1x128xf32, #tpu.memory_space<vmem>>, %arg5: memref<1x8xf32, #tpu.memory_space<vmem>>) attributes {dimension_semantics = [#tpu.dimension_semantics<arbitrary>, #tpu.dimension_semantics<arbitrary>], iteration_bounds = array<i64: 1, 1>, scalar_prefetch = 0 : i64, scratch_operands = 1 : i64, tpu.core_type = #tpu.core_type<tc>, window_params = [{transform_indices = @transform_0, window_bounds = array<i64: 10, 8>}, {transform_indices = @transform_1, window_bounds = array<i64: 1, 8>}, {transform_indices = @transform_2, window_bounds = array<i64: 1, 128>}]} {
    %c0_i32 = arith.constant 0 : i32
    %0 = arith.cmpi eq, %arg1, %c0_i32 : i32
    %1 = arith.extui %0 : i1 to i32
    %c0_i32_0 = arith.constant 0 : i32
    %2 = arith.cmpi ne, %1, %c0_i32_0 : i32
    scf.if %2 {
      %cst_15 = arith.constant 0.000000e+00 : f32
      %39 = vector.broadcast %cst_15 : f32 to vector<1x8xf32>
      %c0_16 = arith.constant 0 : index
      %c0_17 = arith.constant 0 : index
      %40 = vector.load %arg5[%c0_16, %c0_17] : memref<1x8xf32, #tpu.memory_space<vmem>>, vector<1x8xf32>
      tpu.vector_store %arg5[%c0_16, %c0_17], %39 {strides = array<i32>} : memref<1x8xf32, #tpu.memory_space<vmem>>, vector<1x8xf32>,
    } else {
    }
    %c0 = arith.constant 0 : index
    %c0_1 = arith.constant 0 : index
    %3 = vector.load %arg2[%c0, %c0_1] : memref<10x8xf32, #tpu.memory_space<vmem>>, vector<10x8xf32>
    %cst = arith.constant dense<0xFF800000> : vector<8xf32>
    %4 = vector.multi_reduction <maximumf>, %3, %cst [0] : vector<10x8xf32> to vector<8xf32>
    %5 = vector.shape_cast %4 : vector<8xf32> to vector<1x8xf32>
    %6 = vector.broadcast %5 : vector<1x8xf32> to vector<10x8xf32>
    %7 = arith.subf %3, %6 : vector<10x8xf32>
    %8 = math.exp %7 : vector<10x8xf32>
    %cst_2 = arith.constant dense<0.000000e+00> : vector<8xf32>
    %9 = vector.multi_reduction <add>, %8, %cst_2 [0] : vector<10x8xf32> to vector<8xf32>
    %10 = vector.shape_cast %9 : vector<8xf32> to vector<1x8xf32>
    %11 = tpu.reciprocal %10 : vector<1x8xf32> -> vector<1x8xf32>
    %12 = vector.broadcast %11 : vector<1x8xf32> to vector<10x8xf32>
    %13 = arith.mulf %8, %12 : vector<10x8xf32>
    %cst_3 = arith.constant 1.000000e-07 : f32
    %cst_4 = arith.constant 1.000000e+00 : f32
    %14 = vector.broadcast %cst_3 : f32 to vector<10x8xf32>
    %15 = arith.maximumf %14, %13 : vector<10x8xf32>
    %16 = vector.broadcast %cst_4 : f32 to vector<10x8xf32>
    %17 = arith.minimumf %16, %15 : vector<10x8xf32>
    %18 = tpu.iota {dimensions = array<i32: 0>} : vector<10x8xi32>
    %c0_5 = arith.constant 0 : index
    %c0_6 = arith.constant 0 : index
    %19 = vector.load %arg3[%c0_5, %c0_6] : memref<1x8xi32, #tpu.memory_space<vmem>>, vector<1x8xi32>
    %20 = vector.broadcast %19 : vector<1x8xi32> to vector<10x8xi32>
    %21 = arith.cmpi eq, %18, %20 : vector<10x8xi32>
    %cst_7 = arith.constant 0.000000e+00 : f32
    %22 = vector.broadcast %cst_7 : f32 to vector<10x8xf32>
    %23 = arith.select %21, %22, %17 : vector<10x8xi1>, vector<10x8xf32>
    %cst_8 = arith.constant dense<0.000000e+00> : vector<8xf32>
    %24 = vector.multi_reduction <add>, %23, %cst_8 [0] : vector<10x8xf32> to vector<8xf32>
    %25 = vector.shape_cast %24 : vector<8xf32> to vector<1x8xf32>
    %c1_i32 = arith.constant 1 : i32
    %26 = arith.muli %arg0, %c1_i32 : i32
    %27 = arith.addi %26, %arg1 : i32
    %c1_i32_9 = arith.constant 1 : i32
    %28 = arith.addi %27, %c1_i32_9 : i32
    %c8_i32 = arith.constant 8 : i32
    %29 = arith.muli %28, %c8_i32 : i32
    %c8_i32_10 = arith.constant 8 : i32
    %30 = arith.cmpi sgt, %29, %c8_i32_10 : i32
    %true = arith.constant true
    %31 = arith.xori %30, %true : i1
    %32 = arith.extui %31 : i1 to i32
    %c0_i32_11 = arith.constant 0 : i32
    %33 = arith.cmpi ne, %32, %c0_i32_11 : i32
    scf.if %33 {
      %c0_15 = arith.constant 0 : index
      %c0_16 = arith.constant 0 : index
      %39 = vector.load %arg5[%c0_15, %c0_16] : memref<1x8xf32, #tpu.memory_space<vmem>>, vector<1x8xf32>
      %40 = arith.addf %39, %25 : vector<1x8xf32>
      %c0_17 = arith.constant 0 : index
      %c0_18 = arith.constant 0 : index
      %41 = vector.load %arg5[%c0_17, %c0_18] : memref<1x8xf32, #tpu.memory_space<vmem>>, vector<1x8xf32>
      tpu.vector_store %arg5[%c0_17, %c0_18], %40 {strides = array<i32>} : memref<1x8xf32, #tpu.memory_space<vmem>>, vector<1x8xf32>,
    } else {
    }
    %34 = arith.extui %30 : i1 to i32
    %c0_i32_12 = arith.constant 0 : i32
    %35 = arith.cmpi ne, %34, %c0_i32_12 : i32
    scf.if %35 {
      %39 = tpu.iota {dimensions = array<i32: 1>} : vector<1x8xi32>
      %c8_i32_15 = arith.constant 8 : i32
      %40 = arith.muli %27, %c8_i32_15 : i32
      %41 = vector.broadcast %40 : i32 to vector<1x8xi32>
      %42 = arith.addi %39, %41 : vector<1x8xi32>
      %c0_16 = arith.constant 0 : index
      %c0_17 = arith.constant 0 : index
      %43 = vector.load %arg5[%c0_16, %c0_17] : memref<1x8xf32, #tpu.memory_space<vmem>>, vector<1x8xf32>
      %c8_i32_18 = arith.constant 8 : i32
      %44 = vector.broadcast %c8_i32_18 : i32 to vector<1x8xi32>
      %45 = arith.cmpi slt, %42, %44 : vector<1x8xi32>
      %cst_19 = arith.constant 0.000000e+00 : f32
      %46 = vector.broadcast %cst_19 : f32 to vector<1x8xf32>
      %47 = arith.select %45, %25, %46 : vector<1x8xi1>, vector<1x8xf32>
      %48 = arith.addf %43, %47 : vector<1x8xf32>
      %c0_20 = arith.constant 0 : index
      %c0_21 = arith.constant 0 : index
      %49 = vector.load %arg5[%c0_20, %c0_21] : memref<1x8xf32, #tpu.memory_space<vmem>>, vector<1x8xf32>
      tpu.vector_store %arg5[%c0_20, %c0_21], %48 {strides = array<i32>} : memref<1x8xf32, #tpu.memory_space<vmem>>, vector<1x8xf32>,
    } else {
    }
    %c0_i32_13 = arith.constant 0 : i32
    %36 = arith.cmpi eq, %arg1, %c0_i32_13 : i32
    %37 = arith.extui %36 : i1 to i32
    %c0_i32_14 = arith.constant 0 : i32
    %38 = arith.cmpi ne, %37, %c0_i32_14 : i32
    scf.if %38 {
      %c0_15 = arith.constant 0 : index
      %c0_16 = arith.constant 0 : index
      %39 = vector.load %arg5[%c0_15, %c0_16] : memref<1x8xf32, #tpu.memory_space<vmem>>, vector<1x8xf32>
      %cst_17 = arith.constant dense<0.000000e+00> : vector<1xf32>
      %40 = vector.multi_reduction <add>, %39, %cst_17 [1] : vector<1x8xf32> to vector<1xf32>
      %41 = vector.shape_cast %40 : vector<1xf32> to vector<1x1xf32>
      %42 = vector.shape_cast %41 : vector<1x1xf32> to vector<1x1xf32>
      %43 = vector.broadcast %42 : vector<1x1xf32> to vector<1x128xf32>
      %cst_18 = arith.constant 1.15129256 : f32
      %44 = vector.broadcast %cst_18 : f32 to vector<1x128xf32>
      %45 = arith.mulf %43, %44 : vector<1x128xf32>
      %c0_19 = arith.constant 0 : index
      %c0_20 = arith.constant 0 : index
      %46 = vector.load %arg4[%c0_19, %c0_20] : memref<1x128xf32, #tpu.memory_space<vmem>>, vector<1x128xf32>
      tpu.vector_store %arg4[%c0_19, %c0_20], %45 {strides = array<i32>} : memref<1x128xf32, #tpu.memory_space<vmem>>, vector<1x128xf32>,
    } else {
    }
    return
  }
  func.func @transform_0(%arg0: i32, %arg1: i32) -> (i32, i32) {
    %c1_i32 = arith.constant 1 : i32
    %0 = arith.muli %arg0, %c1_i32 : i32
    %1 = arith.addi %0, %arg1 : i32
    %c0_i32 = arith.constant 0 : i32
    %2 = arith.minsi %1, %c0_i32 : i32
    %c0_i32_0 = arith.constant 0 : i32
    %c0_i32_1 = arith.constant 0 : i32
    return %c0_i32_0, %2 : i32, i32
  }
  func.func @transform_1(%arg0: i32, %arg1: i32) -> (i32, i32) {
    %c1_i32 = arith.constant 1 : i32
    %0 = arith.muli %arg0, %c1_i32 : i32
    %1 = arith.addi %0, %arg1 : i32
    %c0_i32 = arith.constant 0 : i32
    %2 = arith.minsi %1, %c0_i32 : i32
    %c0_i32_0 = arith.constant 0 : i32
    %c0_i32_1 = arith.constant 0 : i32
    return %c0_i32_0, %2 : i32, i32
  }
  func.func @transform_2(%arg0: i32, %arg1: i32) -> (i32, i32) {
    %c0_i32 = arith.constant 0 : i32
    %c0_i32_0 = arith.constant 0 : i32
    return %c0_i32, %arg0 : i32, i32
  }
}

module attributes {stable_mosaic.version = 11 : i64} {
  func.func @kernel(%arg0: i32, %arg1: i32, %arg2: memref<10x8xf32, #tpu.memory_space<vmem>>, %arg3: memref<1x8xi32, #tpu.memory_space<vmem>>, %arg4: memref<1x128xf32, #tpu.memory_space<vmem>>, %arg5: memref<1x8xf32, #tpu.memory_space<vmem>>) attributes {dimension_semantics = [#tpu.dimension_semantics<arbitrary>, #tpu.dimension_semantics<arbitrary>], iteration_bounds = array<i64: 1, 1>, scalar_prefetch = 0 : i64, scratch_operands = 1 : i64, tpu.core_type = #tpu.core_type<tc>, window_params = [{transform_indices = @transform_0, window_bounds = array<i64: 10, 8>}, {transform_indices = @transform_1, window_bounds = array<i64: 1, 8>}, {transform_indices = @transform_2, window_bounds = array<i64: 1, 128>}]} {
    %c0_i32 = arith.constant 0 : i32
    %0 = arith.cmpi eq, %arg1, %c0_i32 : i32
    %1 = arith.extui %0 : i1 to i32
    %c0_i32_0 = arith.constant 0 : i32
    %2 = arith.cmpi ne, %1, %c0_i32_0 : i32
    scf.if %2 {
      %cst_15 = arith.constant 0.000000e+00 : f32
      %39 = vector.broadcast %cst_15 : f32 to vector<1x8xf32>
      %c0_16 = arith.constant 0 : index
      %c0_17 = arith.constant 0 : index
      %40 = vector.load %arg5[%c0_16, %c0_17] : memref<1x8xf32, #tpu.memory_space<vmem>>, vector<1x8xf32>
      tpu.vector_store %arg5[%c0_16, %c0_17], %39 {strides = array<i32>} : memref<1x8xf32, #tpu.memory_space<vmem>>, vector<1x8xf32>,
    } else {
    }
    %c0 = arith.constant 0 : index
    %c0_1 = arith.constant 0 : index
    %3 = vector.load %arg2[%c0, %c0_1] : memref<10x8xf32, #tpu.memory_space<vmem>>, vector<10x8xf32>
    %cst = arith.constant dense<0xFF800000> : vector<8xf32>
    %4 = vector.multi_reduction <maximumf>, %3, %cst [0] : vector<10x8xf32> to vector<8xf32>
    %5 = vector.shape_cast %4 : vector<8xf32> to vector<1x8xf32>
    %6 = vector.broadcast %5 : vector<1x8xf32> to vector<10x8xf32>
    %7 = arith.subf %3, %6 : vector<10x8xf32>
    %8 = math.exp %7 : vector<10x8xf32>
    %cst_2 = arith.constant dense<0.000000e+00> : vector<8xf32>
    %9 = vector.multi_reduction <add>, %8, %cst_2 [0] : vector<10x8xf32> to vector<8xf32>
    %10 = vector.shape_cast %9 : vector<8xf32> to vector<1x8xf32>
    %11 = tpu.reciprocal %10 : vector<1x8xf32> -> vector<1x8xf32>
    %12 = vector.broadcast %11 : vector<1x8xf32> to vector<10x8xf32>
    %13 = arith.mulf %8, %12 : vector<10x8xf32>
    %cst_3 = arith.constant 1.000000e-07 : f32
    %cst_4 = arith.constant 1.000000e+00 : f32
    %14 = vector.broadcast %cst_3 : f32 to vector<10x8xf32>
    %15 = arith.maximumf %14, %13 : vector<10x8xf32>
    %16 = vector.broadcast %cst_4 : f32 to vector<10x8xf32>
    %17 = arith.minimumf %16, %15 : vector<10x8xf32>
    %18 = tpu.iota {dimensions = array<i32: 0>} : vector<10x8xi32>
    %c0_5 = arith.constant 0 : index
    %c0_6 = arith.constant 0 : index
    %19 = vector.load %arg3[%c0_5, %c0_6] : memref<1x8xi32, #tpu.memory_space<vmem>>, vector<1x8xi32>
    %20 = vector.broadcast %19 : vector<1x8xi32> to vector<10x8xi32>
    %21 = arith.cmpi eq, %18, %20 : vector<10x8xi32>
    %cst_7 = arith.constant 0.000000e+00 : f32
    %22 = vector.broadcast %cst_7 : f32 to vector<10x8xf32>
    %23 = arith.select %21, %22, %17 : vector<10x8xi1>, vector<10x8xf32>
    %cst_8 = arith.constant dense<0.000000e+00> : vector<8xf32>
    %24 = vector.multi_reduction <add>, %23, %cst_8 [0] : vector<10x8xf32> to vector<8xf32>
    %25 = vector.shape_cast %24 : vector<8xf32> to vector<1x8xf32>
    %c1_i32 = arith.constant 1 : i32
    %26 = arith.muli %arg0, %c1_i32 : i32
    %27 = arith.addi %26, %arg1 : i32
    %c1_i32_9 = arith.constant 1 : i32
    %28 = arith.addi %27, %c1_i32_9 : i32
    %c8_i32 = arith.constant 8 : i32
    %29 = arith.muli %28, %c8_i32 : i32
    %c8_i32_10 = arith.constant 8 : i32
    %30 = arith.cmpi sgt, %29, %c8_i32_10 : i32
    %true = arith.constant true
    %31 = arith.xori %30, %true : i1
    %32 = arith.extui %31 : i1 to i32
    %c0_i32_11 = arith.constant 0 : i32
    %33 = arith.cmpi ne, %32, %c0_i32_11 : i32
    scf.if %33 {
      %c0_15 = arith.constant 0 : index
      %c0_16 = arith.constant 0 : index
      %39 = vector.load %arg5[%c0_15, %c0_16] : memref<1x8xf32, #tpu.memory_space<vmem>>, vector<1x8xf32>
      %40 = arith.addf %39, %25 : vector<1x8xf32>
      %c0_17 = arith.constant 0 : index
      %c0_18 = arith.constant 0 : index
      %41 = vector.load %arg5[%c0_17, %c0_18] : memref<1x8xf32, #tpu.memory_space<vmem>>, vector<1x8xf32>
      tpu.vector_store %arg5[%c0_17, %c0_18], %40 {strides = array<i32>} : memref<1x8xf32, #tpu.memory_space<vmem>>, vector<1x8xf32>,
    } else {
    }
    %34 = arith.extui %30 : i1 to i32
    %c0_i32_12 = arith.constant 0 : i32
    %35 = arith.cmpi ne, %34, %c0_i32_12 : i32
    scf.if %35 {
      %39 = tpu.iota {dimensions = array<i32: 1>} : vector<1x8xi32>
      %c8_i32_15 = arith.constant 8 : i32
      %40 = arith.muli %27, %c8_i32_15 : i32
      %41 = vector.broadcast %40 : i32 to vector<1x8xi32>
      %42 = arith.addi %39, %41 : vector<1x8xi32>
      %c0_16 = arith.constant 0 : index
      %c0_17 = arith.constant 0 : index
      %43 = vector.load %arg5[%c0_16, %c0_17] : memref<1x8xf32, #tpu.memory_space<vmem>>, vector<1x8xf32>
      %c8_i32_18 = arith.constant 8 : i32
      %44 = vector.broadcast %c8_i32_18 : i32 to vector<1x8xi32>
      %45 = arith.cmpi slt, %42, %44 : vector<1x8xi32>
      %cst_19 = arith.constant 0.000000e+00 : f32
      %46 = vector.broadcast %cst_19 : f32 to vector<1x8xf32>
      %47 = arith.select %45, %25, %46 : vector<1x8xi1>, vector<1x8xf32>
      %48 = arith.addf %43, %47 : vector<1x8xf32>
      %c0_20 = arith.constant 0 : index
      %c0_21 = arith.constant 0 : index
      %49 = vector.load %arg5[%c0_20, %c0_21] : memref<1x8xf32, #tpu.memory_space<vmem>>, vector<1x8xf32>
      tpu.vector_store %arg5[%c0_20, %c0_21], %48 {strides = array<i32>} : memref<1x8xf32, #tpu.memory_space<vmem>>, vector<1x8xf32>,
    } else {
    }
    %c0_i32_13 = arith.constant 0 : i32
    %36 = arith.cmpi eq, %arg1, %c0_i32_13 : i32
    %37 = arith.extui %36 : i1 to i32
    %c0_i32_14 = arith.constant 0 : i32
    %38 = arith.cmpi ne, %37, %c0_i32_14 : i32
    scf.if %38 {
      %c0_15 = arith.constant 0 : index
      %c0_16 = arith.constant 0 : index
      %39 = vector.load %arg5[%c0_15, %c0_16] : memref<1x8xf32, #tpu.memory_space<vmem>>, vector<1x8xf32>
      %cst_17 = arith.constant dense<0.000000e+00> : vector<1xf32>
      %40 = vector.multi_reduction <add>, %39, %cst_17 [1] : vector<1x8xf32> to vector<1xf32>
      %41 = vector.shape_cast %40 : vector<1xf32> to vector<1x1xf32>
      %42 = vector.shape_cast %41 : vector<1x1xf32> to vector<1x1xf32>
      %43 = vector.broadcast %42 : vector<1x1xf32> to vector<1x128xf32>
      %cst_18 = arith.constant 1.15129256 : f32
      %44 = vector.broadcast %cst_18 : f32 to vector<1x128xf32>
      %45 = arith.mulf %43, %44 : vector<1x128xf32>
      %c0_19 = arith.constant 0 : index
      %c0_20 = arith.constant 0 : index
      %46 = vector.load %arg4[%c0_19, %c0_20] : memref<1x128xf32, #tpu.memory_space<vmem>>, vector<1x128xf32>
      tpu.vector_store %arg4[%c0_19, %c0_20], %45 {strides = array<i32>} : memref<1x128xf32, #tpu.memory_space<vmem>>, vector<1x128xf32>,
    } else {
    }
    return
  }
  func.func @transform_0(%arg0: i32, %arg1: i32) -> (i32, i32) {
    %c1_i32 = arith.constant 1 : i32
    %0 = arith.muli %arg0, %c1_i32 : i32
    %1 = arith.addi %0, %arg1 : i32
    %c0_i32 = arith.constant 0 : i32
    %2 = arith.minsi %1, %c0_i32 : i32
    %c0_i32_0 = arith.constant 0 : i32
    %c0_i32_1 = arith.constant 0 : i32
    return %c0_i32_0, %2 : i32, i32
  }
  func.func @transform_1(%arg0: i32, %arg1: i32) -> (i32, i32) {
    %c1_i32 = arith.constant 1 : i32
    %0 = arith.muli %arg0, %c1_i32 : i32
    %1 = arith.addi %0, %arg1 : i32
    %c0_i32 = arith.constant 0 : i32
    %2 = arith.minsi %1, %c0_i32 : i32
    %c0_i32_0 = arith.constant 0 : i32
    %c0_i32_1 = arith.constant 0 : i32
    return %c0_i32_0, %2 : i32, i32
  }
  func.func @transform_2(%arg0: i32, %arg1: i32) -> (i32, i32) {
    %c0_i32 = arith.constant 0 : i32
    %c0_i32_0 = arith.constant 0 : i32
    return %c0_i32, %arg0 : i32, i32
  }
}

</mosaic_0001>

<llo_original>
// kernel: tpu_custom_call.1
$region0: #{tpu_custom_call.1}
  #allocation0 [shape = 'u32[]', space=smem, size = 0x4, offset = 0x4, fixed_abs, tag = 'smem constant byte address 0x4 - core index']
  #allocation1 [shape = 'u32[144,128]{1,0:T(1,128)}', space=vmem, size = 0x12000, scoped, tag = 'internal scratch']
  #allocation2 [shape = 'f32[1,8]{1,0:T(1,128)}', space=vmem, size = 0x200, scoped, tag = 'scratch operand']
  %s0 = inlined_call_operand.hbm [shape: f32[8,10], index: 0, kind: input, shape index: {}]
  %s1 = inlined_call_operand.vmem [shape: s32[1,8], index: 1, kind: input, shape index: {}]
  %s2 = inlined_call_operand.hbm [shape: f32[1,128], index: 2, kind: output, shape index: {}]
  %s3 = sld [smem:[#allocation0]]
  $region38: #{tpu_custom_call.1} parent=0
    _
  %s5 = ssub.s32 1, %s3
  %s6 = scalar_select 0, %s5, %s3
  $region1: #{tpu_custom_call.1} parent=0
    #allocation3 [shape = 'u8[4096]{0}', space=vmem, size = 0x1000, scoped, tag = 'input window, operand 0, single buffered']
    #allocation4 [shape = 's32[1]{0}', space=sflag, size = 0x4, scoped, tag = 'scoped memory for tpu_custom_call.1']
    #allocation5 [shape = 's32[1]{0}', space=sflag, size = 0x4, scoped, tag = 'scoped memory for tpu_custom_call.1']
    #allocation6 [shape = 'u8[512]{0}', space=vmem, size = 0x400, scoped, tag = 'output window, operand 0, single buffered']
    %7 = vsyncpa [#allocation4], 0
    %8 = vsyncpa [#allocation5], 0
    // Predicated region
    $region2: #{tpu_custom_call.1} parent=1 // pred_check
      _
    $region3: #{tpu_custom_call.1} parent=1 // pred_check_branch
      %10 = sbr.rel (0) target = $region5
    $region4: #{tpu_custom_call.1} parent=1 // pred_region
      %s11 = sadd.s32 0, 0
      %p12 = scmp.lt.s32.totalorder %s11, 0
      %s13 = scalar_select %p12, %s11, 0
      %s15 = ssub.s32 128, 128
      %16 = vsyncadd [#allocation4], %s15
      %s17 = smul.addr %s13, 128
      %s18 = scalar_lea.hbm %s0, %s17
      %s20 = sshll.u32 [#allocation3], 4
      %s21 = int_to_ptr.vmem [resolvable:$true] %s20
      %23 = dma.hbm_to_vmem [thread:$0]  %s18, 128, %s21, [#allocation4]
    $region5: #{tpu_custom_call.1} parent=1 // pred_fallthru
      _
    // Predicated region
    $region6: #{tpu_custom_call.1} parent=1 // pred_check
      _
    $region7: #{tpu_custom_call.1} parent=1 // pred_check_branch
      %25 = sbr.rel (0) target = $region9
    $region8: #{tpu_custom_call.1} parent=1 // pred_region
      %s26 = sadd.s32 0, 0
      %p27 = scmp.lt.s32.totalorder %s26, 0
      %s28 = scalar_select %p27, %s26, 0
      %p29 = scmp.lt.s32.totalorder %s28, 0
      %s30 = scalar_select %p29, %s28, 0
      %s31 = scalar_lea.vmem %s1, %s30
      %s32 = sadd.s32 0, 0
      %p33 = scmp.lt.s32.totalorder %s32, 0
      %s34 = scalar_select %p33, %s32, 0
    $region9: #{tpu_custom_call.1} parent=1 // pred_fallthru
      _
    // Predicated region
    $region10: #{tpu_custom_call.1} parent=1 // pred_check
      _
    $region11: #{tpu_custom_call.1} parent=1 // pred_check_branch
      %36 = sbr.rel (0) target = $region13
    $region12: #{tpu_custom_call.1} parent=1 // pred_region
      %37 = dma.done [#allocation4], 128
    $region13: #{tpu_custom_call.1} parent=1 // pred_fallthru
      _
    %s38 = sadd.s32 0, 0
    %p39 = scmp.lt.s32.totalorder %s38, 0
    %s40 = scalar_select %p39, %s38, 0
    %p41 = scmp.lt.s32.totalorder %s40, 0
    %s42 = scalar_select %p41, %s40, 0
    %s43 = scalar_lea.vmem %s1, %s42
    %s44 = sadd.s32 0, 0
    %p45 = scmp.lt.s32.totalorder %s44, 0
    %s46 = scalar_select %p45, %s44, 0
    %s47 = sadd.s32 0, 0
    %p48 = scmp.lt.s32.totalorder %s47, 0
    %s49 = scalar_select %p48, %s47, 0
    %p50 = scmp.lt.s32.totalorder %s49, 0
    %s51 = scalar_select %p50, %s49, 0
    %s52 = scalar_lea.vmem %s1, %s51
    %s53 = sadd.s32 0, 0
    %p54 = scmp.lt.s32.totalorder %s53, 0
    %s55 = scalar_select %p54, %s53, 0
    %p56 = scmp.eq.s32.totalorder 0, 0
    // Predicated region
    $region14: #{tpu_custom_call.1} parent=1 // pred_check
      %p57 = pneg %p56
    $region15: #{tpu_custom_call.1} parent=1 // pred_check_branch
      %59 = sbr.rel (%p57) target = $region17
    $region16: #{tpu_custom_call.1} parent=1 // pred_region
      %vm60 = vcmask 57344
      %61 = vst.msk [vmem:[#allocation2] sm:$0x1] %vm60, 0.0
    $region17: #{tpu_custom_call.1} parent=1 // pred_fallthru
      _
    %v62 = vld [vmem:[#allocation3] sm:$0xff]
    %63 = vxpose.xlu0.b32.start [1/16] %v62, 128
    %64 = vxpose.xlu0.b32.cont [2/16] 0.0, 128
    %65 = vxpose.xlu0.b32.cont [3/16] 0.0, 128
    %66 = vxpose.xlu0.b32.cont [4/16] 0.0, 128
    %67 = vxpose.xlu0.b32.cont [5/16] 0.0, 128
    %68 = vxpose.xlu0.b32.cont [6/16] 0.0, 128
    %69 = vxpose.xlu0.b32.cont [7/16] 0.0, 128
    %70 = vxpose.xlu0.b32.cont [8/16] 0.0, 128
    %71 = vxpose.xlu0.b32.cont [9/16] 0.0, 128
    %72 = vxpose.xlu0.b32.cont [10/16] 0.0, 128
    %73 = vxpose.xlu0.b32.cont [11/16] 0.0, 128
    %74 = vxpose.xlu0.b32.cont [12/16] 0.0, 128
    %75 = vxpose.xlu0.b32.cont [13/16] 0.0, 128
    %76 = vxpose.xlu0.b32.cont [14/16] 0.0, 128
    %77 = vxpose.xlu0.b32.cont [15/16] 0.0, 128
    %78 = vxpose.xlu0.b32.end [16/16] 0.0, 128
    %v79 = vpop.trf.xlu0
    %v80 = vpop.trf.xlu0
    %v81 = vpop.trf.xlu0
    %v82 = vpop.trf.xlu0
    %v83 = vpop.trf.xlu0
    %v84 = vpop.trf.xlu0
    %v85 = vpop.trf.xlu0
    %v86 = vpop.trf.xlu0
    %v87 = vpop.trf.xlu0
    %v88 = vpop.trf.xlu0
    %v89 = vpop.trf.xlu0
    %v90 = vpop.trf.xlu0
    %v91 = vpop.trf.xlu0
    %v92 = vpop.trf.xlu0
    %v93 = vpop.trf.xlu0
    %v94 = vpop.trf.xlu0
    %vm95 = vcmask 64512
    %v96 = vsel %vm95, %v79, -inf
    %vm97 = vcmask 58368
    %v98 = vsel %vm97, %v80, -inf
    %v99 = vmax.f32 %v96, %v98
    %v100 = vrot.slane %v99, 4
    %v101 = vmax.f32 %v99, %v100
    %v102 = vrot.slane %v101, 2
    %v103 = vmax.f32 %v101, %v102
    %v104 = vrot.slane %v103, 1
    %v105 = vmax.f32 %v103, %v104
    %v106 = vsub.f32 %v79, %v105
    %v107 = vsub.f32 %v80, %v105
    %v108 = vmul.f32 %v106, 1.442695
    %v109 = vpow.pop %v108
    %v110 = vmul.f32 %v107, 1.442695
    %v111 = vpow.pop %v110
    %v112 = vsel %vm95, %v109, 0.0
    %v113 = vsel %vm97, %v111, 0.0
    %v114 = vadd.f32 %v112, %v113
    %v115 = vrot.slane %v114, 4
    %v116 = vadd.f32 %v114, %v115
    %v117 = vrot.slane %v116, 2
    %v118 = vadd.f32 %v116, %v117
    %v119 = vrot.slane %v118, 1
    %v120 = vadd.f32 %v118, %v119
    %v121 = vrcp.pop %v120
    %v122 = vmul.f32 %v109, %v121
    %v123 = vmul.f32 %v111, %v121
    %v124 = vmax.f32 %v122, 1e-07
    %v125 = vmax.f32 %v123, 1e-07
    %v126 = vmin.f32 %v124, 1.0
    %v127 = vmin.f32 %v125, 1.0
    %v128 = vlaneseq
    %v129 = vshrl.u32 %v128, 7
    %v130 = vadd.s32 %v129, 8
    %v131 = vld [vmem:[%s52] sm:$0x1]
    %v132 = vlaneseq
    %v133 = vshrl.u32 %v132, 7
    %v134 = vsub.s32 0, %v133
    %v135 = vrot.slane %v131, %v134
    %vm136 = vcmp.eq.s32.totalorder %v129, %v135
    %vm137 = vcmp.eq.s32.totalorder %v130, %v135
    %v138 = vsel %vm136, 0.0, %v126
    %v139 = vsel %vm137, 0.0, %v127
    %v140 = vsel %vm95, %v138, 0.0
    %v141 = vsel %vm97, %v139, 0.0
    %v142 = vadd.f32 %v140, %v141
    %v143 = vrot.slane %v142, 4
    %v144 = vadd.f32 %v142, %v143
    %v145 = vrot.slane %v144, 2
    %v146 = vadd.f32 %v144, %v145
    %v147 = vrot.slane %v146, 1
    %v148 = vadd.f32 %v146, %v147
    %s149 = sadd.s32 0, 0
    %s150 = sadd.s32 %s149, 1
    %s151 = smul.u32 %s150, 8
    %p152 = scmp.gt.s32.totalorder %s151, 8
    %p153 = scmp.le.s32.totalorder %s151, 8
    // Predicated region
    $region18: #{tpu_custom_call.1} parent=1 // pred_check
      %p154 = pneg %p153
    $region19: #{tpu_custom_call.1} parent=1 // pred_check_branch
      %156 = sbr.rel (%p154) target = $region21
    $region20: #{tpu_custom_call.1} parent=1 // pred_region
      %v157 = vld [vmem:[#allocation2] sm:$0x1]
      %v158 = vadd.f32 %v157, %v148
      %vm159 = vcmask 57344
      %160 = vst.msk [vmem:[#allocation2] sm:$0x1] %vm159, %v158
    $region21: #{tpu_custom_call.1} parent=1 // pred_fallthru
      _
    // Predicated region
    $region22: #{tpu_custom_call.1} parent=1 // pred_check
      %p161 = pneg %p152
    $region23: #{tpu_custom_call.1} parent=1 // pred_check_branch
      %163 = sbr.rel (%p161) target = $region25
    $region24: #{tpu_custom_call.1} parent=1 // pred_region
      %v164 = vlaneseq
      %v165 = vand.u32 %v164, 127
      %s166 = smul.u32 %s149, 8
      %v167 = vstv %s166
      %v168 = vadd.s32 %v165, %v167
      %v169 = vld [vmem:[#allocation2] sm:$0x1]
      %vm170 = vcmp.lt.s32.totalorder %v168, 8
      %v171 = vsel %vm170, %v148, 0.0
      %v172 = vadd.f32 %v169, %v171
      %vm173 = vcmask 57344
      %174 = vst.msk [vmem:[#allocation2] sm:$0x1] %vm173, %v172
    $region25: #{tpu_custom_call.1} parent=1 // pred_fallthru
      _
    // Predicated region
    $region26: #{tpu_custom_call.1} parent=1 // pred_check
      %p175 = pneg %p56
    $region27: #{tpu_custom_call.1} parent=1 // pred_check_branch
      %177 = sbr.rel (%p175) target = $region29
    $region28: #{tpu_custom_call.1} parent=1 // pred_region
      %v178 = vld [vmem:[#allocation2] sm:$0x1]
      %vm179 = vcmask 57344
      %v180 = vsel %vm179, %v178, 0.0
      %181 = vadd.xlane.f32.xlu0 %v180
      %v182 = vpop.xlane.xlu0 %181
      %v183 = vmul.f32 %v182, 1.1512926
      %184 = vst [vmem:[#allocation6] sm:$0x1] %v183
    $region29: #{tpu_custom_call.1} parent=1 // pred_fallthru
      _
    // Predicated region
    $region30: #{tpu_custom_call.1} parent=1 // pred_check
      _
    $region31: #{tpu_custom_call.1} parent=1 // pred_check_branch
      %186 = sbr.rel (0) target = $region33
    $region32: #{tpu_custom_call.1} parent=1 // pred_region
      %s188 = ssub.s32 16, 16
      %189 = vsyncadd [#allocation5], %s188
      %s191 = sshll.u32 [#allocation6], 4
      %s192 = int_to_ptr.vmem [resolvable:$true] %s191
      %194 = dma.vmem_to_hbm [thread:$0]  %s192, 16, %s2, [#allocation5]
    $region33: #{tpu_custom_call.1} parent=1 // pred_fallthru
      _
    // Predicated region
    $region34: #{tpu_custom_call.1} parent=1 // pred_check
      _
    $region35: #{tpu_custom_call.1} parent=1 // pred_check_branch
      %196 = sbr.rel (0) target = $region37
    $region36: #{tpu_custom_call.1} parent=1 // pred_region
      %197 = dma.done [#allocation5], 16
    $region37: #{tpu_custom_call.1} parent=1 // pred_fallthru
      _
    %198 = vsyncpa [#allocation4], 1
    %199 = vsyncpa [#allocation5], 1

// kernel: tpu_custom_call.1
$region0: #{tpu_custom_call.1}
  #allocation0 [shape = 'u32[]', space=smem, size = 0x4, offset = 0x4, fixed_abs, tag = 'smem constant byte address 0x4 - core index']
  #allocation1 [shape = 'u32[144,128]{1,0:T(1,128)}', space=vmem, size = 0x12000, scoped, tag = 'internal scratch']
  #allocation2 [shape = 'f32[1,8]{1,0:T(1,128)}', space=vmem, size = 0x200, scoped, tag = 'scratch operand']
  %s0 = inlined_call_operand.vmem [shape: f32[10,8], index: 0, kind: input, shape index: {}]
  %s1 = inlined_call_operand.vmem [shape: s32[1,8], index: 1, kind: input, shape index: {}]
  %s2 = inlined_call_operand.hbm [shape: f32[1,128], index: 2, kind: output, shape index: {}]
  %s3 = sld [smem:[#allocation0]]
  $region34: #{tpu_custom_call.1} parent=0
    _
  %s5 = ssub.s32 1, %s3
  %s6 = scalar_select 0, %s5, %s3
  $region1: #{tpu_custom_call.1} parent=0
    #allocation3 [shape = 'u8[512]{0}', space=vmem, size = 0x400, scoped, tag = 'output window, operand 0, single buffered']
    #allocation4 [shape = 's32[1]{0}', space=sflag, size = 0x4, scoped, tag = 'scoped memory for tpu_custom_call.1']
    %7 = vsyncpa [#allocation4], 0
    // Predicated region
    $region2: #{tpu_custom_call.1} parent=1 // pred_check
      _
    $region3: #{tpu_custom_call.1} parent=1 // pred_check_branch
      %9 = sbr.rel (0) target = $region5
    $region4: #{tpu_custom_call.1} parent=1 // pred_region
      %s10 = sadd.s32 0, 0
      %p11 = scmp.lt.s32.totalorder %s10, 0
      %s12 = scalar_select %p11, %s10, 0
      %p13 = scmp.lt.s32.totalorder %s12, 0
      %s14 = scalar_select %p13, %s12, 0
      %s15 = smul.addr %s14, 8
      %s16 = scalar_lea.vmem %s0, %s15
      %s17 = sadd.s32 0, 0
      %p18 = scmp.lt.s32.totalorder %s17, 0
      %s19 = scalar_select %p18, %s17, 0
    $region5: #{tpu_custom_call.1} parent=1 // pred_fallthru
      _
    // Predicated region
    $region6: #{tpu_custom_call.1} parent=1 // pred_check
      _
    $region7: #{tpu_custom_call.1} parent=1 // pred_check_branch
      %21 = sbr.rel (0) target = $region9
    $region8: #{tpu_custom_call.1} parent=1 // pred_region
      %s22 = sadd.s32 0, 0
      %p23 = scmp.lt.s32.totalorder %s22, 0
      %s24 = scalar_select %p23, %s22, 0
      %p25 = scmp.lt.s32.totalorder %s24, 0
      %s26 = scalar_select %p25, %s24, 0
      %s27 = scalar_lea.vmem %s1, %s26
      %s28 = sadd.s32 0, 0
      %p29 = scmp.lt.s32.totalorder %s28, 0
      %s30 = scalar_select %p29, %s28, 0
    $region9: #{tpu_custom_call.1} parent=1 // pred_fallthru
      _
    %s31 = sadd.s32 0, 0
    %p32 = scmp.lt.s32.totalorder %s31, 0
    %s33 = scalar_select %p32, %s31, 0
    %p34 = scmp.lt.s32.totalorder %s33, 0
    %s35 = scalar_select %p34, %s33, 0
    %s36 = smul.addr %s35, 8
    %s37 = scalar_lea.vmem %s0, %s36
    %s38 = sadd.s32 0, 0
    %p39 = scmp.lt.s32.totalorder %s38, 0
    %s40 = scalar_select %p39, %s38, 0
    %p41 = scmp.lt.s32.totalorder %s40, 0
    %s42 = scalar_select %p41, %s40, 0
    %s43 = scalar_lea.vmem %s1, %s42
    %s44 = sadd.s32 0, 0
    %p45 = scmp.lt.s32.totalorder %s44, 0
    %s46 = scalar_select %p45, %s44, 0
    %p47 = scmp.lt.s32.totalorder %s46, 0
    %s48 = scalar_select %p47, %s46, 0
    %s49 = smul.addr %s48, 8
    %s50 = scalar_lea.vmem %s0, %s49
    %s51 = sadd.s32 0, 0
    %p52 = scmp.lt.s32.totalorder %s51, 0
    %s53 = scalar_select %p52, %s51, 0
    %s54 = sadd.s32 0, 0
    %p55 = scmp.lt.s32.totalorder %s54, 0
    %s56 = scalar_select %p55, %s54, 0
    %p57 = scmp.lt.s32.totalorder %s56, 0
    %s58 = scalar_select %p57, %s56, 0
    %s59 = scalar_lea.vmem %s1, %s58
    %s60 = sadd.s32 0, 0
    %p61 = scmp.lt.s32.totalorder %s60, 0
    %s62 = scalar_select %p61, %s60, 0
    %p63 = scmp.eq.s32.totalorder 0, 0
    // Predicated region
    $region10: #{tpu_custom_call.1} parent=1 // pred_check
      %p64 = pneg %p63
    $region11: #{tpu_custom_call.1} parent=1 // pred_check_branch
      %66 = sbr.rel (%p64) target = $region13
    $region12: #{tpu_custom_call.1} parent=1 // pred_region
      %vm67 = vcmask 57344
      %68 = vst.msk [vmem:[#allocation2] sm:$0x1] %vm67, 0.0
    $region13: #{tpu_custom_call.1} parent=1 // pred_fallthru
      _
    %v69 = vld [vmem:[%s50] sm:$0xff]
    %v70 = vld [vmem:[%s50 + $0x8] sm:$0x3]
    %vm71 = vcmask 64512
    %v72 = vsel %vm71, %v69, -inf
    %vm73 = vcmask 58368
    %v74 = vsel %vm73, %v70, -inf
    %v75 = vmax.f32 %v72, %v74
    %v76 = vrot.slane %v75, 4
    %v77 = vmax.f32 %v75, %v76
    %v78 = vrot.slane %v77, 2
    %v79 = vmax.f32 %v77, %v78
    %v80 = vrot.slane %v79, 1
    %v81 = vmax.f32 %v79, %v80
    %v82 = vsub.f32 %v69, %v81
    %v83 = vsub.f32 %v70, %v81
    %v84 = vmul.f32 %v82, 1.442695
    %v85 = vpow.pop %v84
    %v86 = vmul.f32 %v83, 1.442695
    %v87 = vpow.pop %v86
    %v88 = vsel %vm71, %v85, 0.0
    %v89 = vsel %vm73, %v87, 0.0
    %v90 = vadd.f32 %v88, %v89
    %v91 = vrot.slane %v90, 4
    %v92 = vadd.f32 %v90, %v91
    %v93 = vrot.slane %v92, 2
    %v94 = vadd.f32 %v92, %v93
    %v95 = vrot.slane %v94, 1
    %v96 = vadd.f32 %v94, %v95
    %v97 = vrcp.pop %v96
    %v98 = vmul.f32 %v85, %v97
    %v99 = vmul.f32 %v87, %v97
    %v100 = vmax.f32 %v98, 1e-07
    %v101 = vmax.f32 %v99, 1e-07
    %v102 = vmin.f32 %v100, 1.0
    %v103 = vmin.f32 %v101, 1.0
    %v104 = vlaneseq
    %v105 = vshrl.u32 %v104, 7
    %v106 = vadd.s32 %v105, 8
    %v107 = vld [vmem:[%s59] sm:$0x1]
    %v108 = vlaneseq
    %v109 = vshrl.u32 %v108, 7
    %v110 = vsub.s32 0, %v109
    %v111 = vrot.slane %v107, %v110
    %vm112 = vcmp.eq.s32.totalorder %v105, %v111
    %vm113 = vcmp.eq.s32.totalorder %v106, %v111
    %v114 = vsel %vm112, 0.0, %v102
    %v115 = vsel %vm113, 0.0, %v103
    %v116 = vsel %vm71, %v114, 0.0
    %v117 = vsel %vm73, %v115, 0.0
    %v118 = vadd.f32 %v116, %v117
    %v119 = vrot.slane %v118, 4
    %v120 = vadd.f32 %v118, %v119
    %v121 = vrot.slane %v120, 2
    %v122 = vadd.f32 %v120, %v121
    %v123 = vrot.slane %v122, 1
    %v124 = vadd.f32 %v122, %v123
    %s125 = sadd.s32 0, 0
    %s126 = sadd.s32 %s125, 1
    %s127 = smul.u32 %s126, 8
    %p128 = scmp.gt.s32.totalorder %s127, 8
    %p129 = scmp.le.s32.totalorder %s127, 8
    // Predicated region
    $region14: #{tpu_custom_call.1} parent=1 // pred_check
      %p130 = pneg %p129
    $region15: #{tpu_custom_call.1} parent=1 // pred_check_branch
      %132 = sbr.rel (%p130) target = $region17
    $region16: #{tpu_custom_call.1} parent=1 // pred_region
      %v133 = vld [vmem:[#allocation2] sm:$0x1]
      %v134 = vadd.f32 %v133, %v124
      %vm135 = vcmask 57344
      %136 = vst.msk [vmem:[#allocation2] sm:$0x1] %vm135, %v134
    $region17: #{tpu_custom_call.1} parent=1 // pred_fallthru
      _
    // Predicated region
    $region18: #{tpu_custom_call.1} parent=1 // pred_check
      %p137 = pneg %p128
    $region19: #{tpu_custom_call.1} parent=1 // pred_check_branch
      %139 = sbr.rel (%p137) target = $region21
    $region20: #{tpu_custom_call.1} parent=1 // pred_region
      %v140 = vlaneseq
      %v141 = vand.u32 %v140, 127
      %s142 = smul.u32 %s125, 8
      %v143 = vstv %s142
      %v144 = vadd.s32 %v141, %v143
      %v145 = vld [vmem:[#allocation2] sm:$0x1]
      %vm146 = vcmp.lt.s32.totalorder %v144, 8
      %v147 = vsel %vm146, %v124, 0.0
      %v148 = vadd.f32 %v145, %v147
      %vm149 = vcmask 57344
      %150 = vst.msk [vmem:[#allocation2] sm:$0x1] %vm149, %v148
    $region21: #{tpu_custom_call.1} parent=1 // pred_fallthru
      _
    // Predicated region
    $region22: #{tpu_custom_call.1} parent=1 // pred_check
      %p151 = pneg %p63
    $region23: #{tpu_custom_call.1} parent=1 // pred_check_branch
      %153 = sbr.rel (%p151) target = $region25
    $region24: #{tpu_custom_call.1} parent=1 // pred_region
      %v154 = vld [vmem:[#allocation2] sm:$0x1]
      %vm155 = vcmask 57344
      %v156 = vsel %vm155, %v154, 0.0
      %157 = vadd.xlane.f32.xlu0 %v156
      %v158 = vpop.xlane.xlu0 %157
      %v159 = vmul.f32 %v158, 1.1512926
      %160 = vst [vmem:[#allocation3] sm:$0x1] %v159
    $region25: #{tpu_custom_call.1} parent=1 // pred_fallthru
      _
    // Predicated region
    $region26: #{tpu_custom_call.1} parent=1 // pred_check
      _
    $region27: #{tpu_custom_call.1} parent=1 // pred_check_branch
      %162 = sbr.rel (0) target = $region29
    $region28: #{tpu_custom_call.1} parent=1 // pred_region
      %s164 = ssub.s32 16, 16
      %165 = vsyncadd [#allocation4], %s164
      %s167 = sshll.u32 [#allocation3], 4
      %s168 = int_to_ptr.vmem [resolvable:$true] %s167
      %170 = dma.vmem_to_hbm [thread:$0]  %s168, 16, %s2, [#allocation4]
    $region29: #{tpu_custom_call.1} parent=1 // pred_fallthru
      _
    // Predicated region
    $region30: #{tpu_custom_call.1} parent=1 // pred_check
      _
    $region31: #{tpu_custom_call.1} parent=1 // pred_check_branch
      %172 = sbr.rel (0) target = $region33
    $region32: #{tpu_custom_call.1} parent=1 // pred_region
      %173 = dma.done [#allocation4], 16
    $region33: #{tpu_custom_call.1} parent=1 // pred_fallthru
      _
    %174 = vsyncpa [#allocation4], 1

// kernel: tpu_custom_call.1
$region0: #{tpu_custom_call.1}
  #allocation0 [shape = 'u32[]', space=smem, size = 0x4, offset = 0x4, fixed_abs, tag = 'smem constant byte address 0x4 - core index']
  #allocation1 [shape = 'u32[144,128]{1,0:T(1,128)}', space=vmem, size = 0x12000, scoped, tag = 'internal scratch']
  #allocation2 [shape = 'f32[1,8]{1,0:T(1,128)}', space=vmem, size = 0x200, scoped, tag = 'scratch operand']
  %s0 = inlined_call_operand.vmem [shape: f32[10,8], index: 0, kind: input, shape index: {}]
  %s1 = inlined_call_operand.vmem [shape: s32[1,8], index: 1, kind: input, shape index: {}]
  %s2 = inlined_call_operand.hbm [shape: f32[1,128], index: 2, kind: output, shape index: {}]
  %s3 = sld [smem:[#allocation0]]
  $region34: #{tpu_custom_call.1} parent=0
    _
  %s5 = ssub.s32 1, %s3
  %s6 = scalar_select 0, %s5, %s3
  $region1: #{tpu_custom_call.1} parent=0
    #allocation3 [shape = 'u8[512]{0}', space=vmem, size = 0x400, scoped, tag = 'output window, operand 0, single buffered']
    #allocation4 [shape = 's32[1]{0}', space=sflag, size = 0x4, scoped, tag = 'scoped memory for tpu_custom_call.1']
    %7 = vsyncpa [#allocation4], 0
    // Predicated region
    $region2: #{tpu_custom_call.1} parent=1 // pred_check
      _
    $region3: #{tpu_custom_call.1} parent=1 // pred_check_branch
      %9 = sbr.rel (0) target = $region5
    $region4: #{tpu_custom_call.1} parent=1 // pred_region
      %s10 = sadd.s32 0, 0
      %p11 = scmp.lt.s32.totalorder %s10, 0
      %s12 = scalar_select %p11, %s10, 0
      %p13 = scmp.lt.s32.totalorder %s12, 0
      %s14 = scalar_select %p13, %s12, 0
      %s15 = smul.addr %s14, 8
      %s16 = scalar_lea.vmem %s0, %s15
      %s17 = sadd.s32 0, 0
      %p18 = scmp.lt.s32.totalorder %s17, 0
      %s19 = scalar_select %p18, %s17, 0
    $region5: #{tpu_custom_call.1} parent=1 // pred_fallthru
      _
    // Predicated region
    $region6: #{tpu_custom_call.1} parent=1 // pred_check
      _
    $region7: #{tpu_custom_call.1} parent=1 // pred_check_branch
      %21 = sbr.rel (0) target = $region9
    $region8: #{tpu_custom_call.1} parent=1 // pred_region
      %s22 = sadd.s32 0, 0
      %p23 = scmp.lt.s32.totalorder %s22, 0
      %s24 = scalar_select %p23, %s22, 0
      %p25 = scmp.lt.s32.totalorder %s24, 0
      %s26 = scalar_select %p25, %s24, 0
      %s27 = scalar_lea.vmem %s1, %s26
      %s28 = sadd.s32 0, 0
      %p29 = scmp.lt.s32.totalorder %s28, 0
      %s30 = scalar_select %p29, %s28, 0
    $region9: #{tpu_custom_call.1} parent=1 // pred_fallthru
      _
    %s31 = sadd.s32 0, 0
    %p32 = scmp.lt.s32.totalorder %s31, 0
    %s33 = scalar_select %p32, %s31, 0
    %p34 = scmp.lt.s32.totalorder %s33, 0
    %s35 = scalar_select %p34, %s33, 0
    %s36 = smul.addr %s35, 8
    %s37 = scalar_lea.vmem %s0, %s36
    %s38 = sadd.s32 0, 0
    %p39 = scmp.lt.s32.totalorder %s38, 0
    %s40 = scalar_select %p39, %s38, 0
    %p41 = scmp.lt.s32.totalorder %s40, 0
    %s42 = scalar_select %p41, %s40, 0
    %s43 = scalar_lea.vmem %s1, %s42
    %s44 = sadd.s32 0, 0
    %p45 = scmp.lt.s32.totalorder %s44, 0
    %s46 = scalar_select %p45, %s44, 0
    %p47 = scmp.lt.s32.totalorder %s46, 0
    %s48 = scalar_select %p47, %s46, 0
    %s49 = smul.addr %s48, 8
    %s50 = scalar_lea.vmem %s0, %s49
    %s51 = sadd.s32 0, 0
    %p52 = scmp.lt.s32.totalorder %s51, 0
    %s53 = scalar_select %p52, %s51, 0
    %s54 = sadd.s32 0, 0
    %p55 = scmp.lt.s32.totalorder %s54, 0
    %s56 = scalar_select %p55, %s54, 0
    %p57 = scmp.lt.s32.totalorder %s56, 0
    %s58 = scalar_select %p57, %s56, 0
    %s59 = scalar_lea.vmem %s1, %s58
    %s60 = sadd.s32 0, 0
    %p61 = scmp.lt.s32.totalorder %s60, 0
    %s62 = scalar_select %p61, %s60, 0
    %p63 = scmp.eq.s32.totalorder 0, 0
    // Predicated region
    $region10: #{tpu_custom_call.1} parent=1 // pred_check
      %p64 = pneg %p63
    $region11: #{tpu_custom_call.1} parent=1 // pred_check_branch
      %66 = sbr.rel (%p64) target = $region13
    $region12: #{tpu_custom_call.1} parent=1 // pred_region
      %vm67 = vcmask 57344
      %68 = vst.msk [vmem:[#allocation2] sm:$0x1] %vm67, 0.0
    $region13: #{tpu_custom_call.1} parent=1 // pred_fallthru
      _
    %v69 = vld [vmem:[%s50] sm:$0xff]
    %v70 = vld [vmem:[%s50 + $0x8] sm:$0x3]
    %vm71 = vcmask 64512
    %v72 = vsel %vm71, %v69, -inf
    %vm73 = vcmask 58368
    %v74 = vsel %vm73, %v70, -inf
    %v75 = vmax.f32 %v72, %v74
    %v76 = vrot.slane %v75, 4
    %v77 = vmax.f32 %v75, %v76
    %v78 = vrot.slane %v77, 2
    %v79 = vmax.f32 %v77, %v78
    %v80 = vrot.slane %v79, 1
    %v81 = vmax.f32 %v79, %v80
    %v82 = vsub.f32 %v69, %v81
    %v83 = vsub.f32 %v70, %v81
    %v84 = vmul.f32 %v82, 1.442695
    %v85 = vpow.pop %v84
    %v86 = vmul.f32 %v83, 1.442695
    %v87 = vpow.pop %v86
    %v88 = vsel %vm71, %v85, 0.0
    %v89 = vsel %vm73, %v87, 0.0
    %v90 = vadd.f32 %v88, %v89
    %v91 = vrot.slane %v90, 4
    %v92 = vadd.f32 %v90, %v91
    %v93 = vrot.slane %v92, 2
    %v94 = vadd.f32 %v92, %v93
    %v95 = vrot.slane %v94, 1
    %v96 = vadd.f32 %v94, %v95
    %v97 = vrcp.pop %v96
    %v98 = vmul.f32 %v85, %v97
    %v99 = vmul.f32 %v87, %v97
    %v100 = vmax.f32 %v98, 1e-07
    %v101 = vmax.f32 %v99, 1e-07
    %v102 = vmin.f32 %v100, 1.0
    %v103 = vmin.f32 %v101, 1.0
    %v104 = vlaneseq
    %v105 = vshrl.u32 %v104, 7
    %v106 = vadd.s32 %v105, 8
    %v107 = vld [vmem:[%s59] sm:$0x1]
    %v108 = vlaneseq
    %v109 = vshrl.u32 %v108, 7
    %v110 = vsub.s32 0, %v109
    %v111 = vrot.slane %v107, %v110
    %vm112 = vcmp.eq.s32.totalorder %v105, %v111
    %vm113 = vcmp.eq.s32.totalorder %v106, %v111
    %v114 = vsel %vm112, 0.0, %v102
    %v115 = vsel %vm113, 0.0, %v103
    %v116 = vsel %vm71, %v114, 0.0
    %v117 = vsel %vm73, %v115, 0.0
    %v118 = vadd.f32 %v116, %v117
    %v119 = vrot.slane %v118, 4
    %v120 = vadd.f32 %v118, %v119
    %v121 = vrot.slane %v120, 2
    %v122 = vadd.f32 %v120, %v121
    %v123 = vrot.slane %v122, 1
    %v124 = vadd.f32 %v122, %v123
    %s125 = sadd.s32 0, 0
    %s126 = sadd.s32 %s125, 1
    %s127 = smul.u32 %s126, 8
    %p128 = scmp.gt.s32.totalorder %s127, 8
    %p129 = scmp.le.s32.totalorder %s127, 8
    // Predicated region
    $region14: #{tpu_custom_call.1} parent=1 // pred_check
      %p130 = pneg %p129
    $region15: #{tpu_custom_call.1} parent=1 // pred_check_branch
      %132 = sbr.rel (%p130) target = $region17
    $region16: #{tpu_custom_call.1} parent=1 // pred_region
      %v133 = vld [vmem:[#allocation2] sm:$0x1]
      %v134 = vadd.f32 %v133, %v124
      %vm135 = vcmask 57344
      %136 = vst.msk [vmem:[#allocation2] sm:$0x1] %vm135, %v134
    $region17: #{tpu_custom_call.1} parent=1 // pred_fallthru
      _
    // Predicated region
    $region18: #{tpu_custom_call.1} parent=1 // pred_check
      %p137 = pneg %p128
    $region19: #{tpu_custom_call.1} parent=1 // pred_check_branch
      %139 = sbr.rel (%p137) target = $region21
    $region20: #{tpu_custom_call.1} parent=1 // pred_region
      %v140 = vlaneseq
      %v141 = vand.u32 %v140, 127
      %s142 = smul.u32 %s125, 8
      %v143 = vstv %s142
      %v144 = vadd.s32 %v141, %v143
      %v145 = vld [vmem:[#allocation2] sm:$0x1]
      %vm146 = vcmp.lt.s32.totalorder %v144, 8
      %v147 = vsel %vm146, %v124, 0.0
      %v148 = vadd.f32 %v145, %v147
      %vm149 = vcmask 57344
      %150 = vst.msk [vmem:[#allocation2] sm:$0x1] %vm149, %v148
    $region21: #{tpu_custom_call.1} parent=1 // pred_fallthru
      _
    // Predicated region
    $region22: #{tpu_custom_call.1} parent=1 // pred_check
      %p151 = pneg %p63
    $region23: #{tpu_custom_call.1} parent=1 // pred_check_branch
      %153 = sbr.rel (%p151) target = $region25
    $region24: #{tpu_custom_call.1} parent=1 // pred_region
      %v154 = vld [vmem:[#allocation2] sm:$0x1]
      %vm155 = vcmask 57344
      %v156 = vsel %vm155, %v154, 0.0
      %157 = vadd.xlane.f32.xlu0 %v156
      %v158 = vpop.xlane.xlu0 %157
      %v159 = vmul.f32 %v158, 1.1512926
      %160 = vst [vmem:[#allocation3] sm:$0x1] %v159
    $region25: #{tpu_custom_call.1} parent=1 // pred_fallthru
      _
    // Predicated region
    $region26: #{tpu_custom_call.1} parent=1 // pred_check
      _
    $region27: #{tpu_custom_call.1} parent=1 // pred_check_branch
      %162 = sbr.rel (0) target = $region29
    $region28: #{tpu_custom_call.1} parent=1 // pred_region
      %s164 = ssub.s32 16, 16
      %165 = vsyncadd [#allocation4], %s164
      %s167 = sshll.u32 [#allocation3], 4
      %s168 = int_to_ptr.vmem [resolvable:$true] %s167
      %170 = dma.vmem_to_hbm [thread:$0]  %s168, 16, %s2, [#allocation4]
    $region29: #{tpu_custom_call.1} parent=1 // pred_fallthru
      _
    // Predicated region
    $region30: #{tpu_custom_call.1} parent=1 // pred_check
      _
    $region31: #{tpu_custom_call.1} parent=1 // pred_check_branch
      %172 = sbr.rel (0) target = $region33
    $region32: #{tpu_custom_call.1} parent=1 // pred_region
      %173 = dma.done [#allocation4], 16
    $region33: #{tpu_custom_call.1} parent=1 // pred_fallthru
      _
    %174 = vsyncpa [#allocation4], 1

</llo_original>
